<compile_context>
chip_gen: v6e
topology: v6e:2x2x1
jax: 0.10.0
libtpu: 0.0.40
codegen_flags: <defaults>
</compile_context>

<pallas_src>
import functools
from typing import NamedTuple

import jax
import jax.numpy as jnp
from jax.experimental import pallas as pl
from jax.experimental.pallas import tpu as pltpu


# --------------------------------------------------------------------------
# Kernel
# --------------------------------------------------------------------------
def _mlp_kernel(x_ref,
                w1_ref, b1_ref,
                w2_ref, b2_ref,
                w3_ref, b3_ref,
                w4_ref, b4_ref,
                o_ref):
    """relu(xW1+b1) -> relu(.W2+b2) -> relu(.W3+b3) -> .W4+b4 (no final relu).

    Everything f32; matmuls accumulate in f32 via preferred_element_type.
    """
    h = jnp.dot(x_ref[...], w1_ref[...], preferred_element_type=jnp.float32)
    h = jnp.maximum(h + b1_ref[...], 0.0)

    h = jnp.dot(h, w2_ref[...], preferred_element_type=jnp.float32)
    h = jnp.maximum(h + b2_ref[...], 0.0)

    h = jnp.dot(h, w3_ref[...], preferred_element_type=jnp.float32)
    h = jnp.maximum(h + b3_ref[...], 0.0)

    h = jnp.dot(h, w4_ref[...], preferred_element_type=jnp.float32)
    o_ref[...] = (h + b4_ref[...]).astype(o_ref.dtype)


# --------------------------------------------------------------------------
# Helpers
# --------------------------------------------------------------------------
def _round_up(n, m):
    return ((n + m - 1) // m) * m


def _cdiv(a, b):
    return -(-a // b)


def _auto_batch_tile(B, *, max_tile=2048, min_tile=128, target_steps=8):
    """Aim for ~target_steps grid steps so per-step pipeline overhead (~0.35us)
    is amortized and both v7x TensorCores get >= 2 steps each; cap the tile at
    2048 rows (per-step live set stays ~ a few MiB, well under scoped VMEM)."""
    tile = _round_up(_cdiv(B, target_steps), min_tile)
    return int(min(max_tile, max(min_tile, tile)))


def _vmem_bytes_estimate(batch_tile, in_dim, hid, hid2, hid3_p, out_p):
    """Rough per-step VMEM footprint (f32): double-buffered x/out tiles, live
    intermediates, and double-buffer-worst-case params."""
    io = 2 * 4 * batch_tile * (in_dim + out_p)
    acts = 4 * batch_tile * (hid + hid2 + hid3_p + out_p)
    param = 2 * 4 * (in_dim * hid + hid * hid2 + hid2 * hid3_p + hid3_p * out_p
                     + hid + hid2 + hid3_p + out_p)
    return io + acts + param


# --------------------------------------------------------------------------
# One-time parameter preparation (hoisted out of the forward)
# --------------------------------------------------------------------------
class PreparedParams(NamedTuple):
    arrays: dict      # lane-padded, bias-folded f32 arrays (w1..w4, b1..b4)
    out_dim: int      # true (unpadded) output width
    out_padded: int   # lane-padded output width


def prepare_params(params, *, lane=128):
    """One-time prep: fold the extra nn.Parameter bias (ebX) into the Linear
    bias, zero-pad the ragged hid3 dim and the output dim up to a multiple of
    128 lanes (lane-dense intermediates / output stores), keep f32.

    Weights are expected in (in, out) layout (i.e. torch `weight.T`)."""
    w = [jnp.asarray(params[f"w{i}"], jnp.float32) for i in range(1, 5)]
    b = [(jnp.asarray(params[f"b{i}"], jnp.float32)
          + jnp.asarray(params[f"eb{i}"], jnp.float32)).reshape(1, -1)
         for i in range(1, 5)]

    hid3 = w[2].shape[1]
    out_ = w[3].shape[1]
    hid3_p = _round_up(hid3, lane)
    out_p = _round_up(out_, lane)

    # zero-padded w3/b3 columns give relu(0)=0; zero-padded w4 rows contribute
    # nothing -> padding is exact.
    w3 = jnp.pad(w[2], ((0, 0), (0, hid3_p - hid3)))
    b3 = jnp.pad(b[2], ((0, 0), (0, hid3_p - hid3)))
    w4 = jnp.pad(w[3], ((0, hid3_p - hid3), (0, out_p - out_)))
    b4 = jnp.pad(b[3], ((0, 0), (0, out_p - out_)))

    arrays = dict(w1=w[0], b1=b[0], w2=w[1], b2=b[1],
                  w3=w3, b3=b3, w4=w4, b4=b4)
    return PreparedParams(arrays=arrays, out_dim=out_, out_padded=out_p)


# --------------------------------------------------------------------------
# Forward
# --------------------------------------------------------------------------
@functools.partial(
    jax.jit,
    static_argnames=("out_dim", "batch_tile", "min_pallas_batch", "slice_output"))
def _forward_impl(x, arrays, *, out_dim, batch_tile, min_pallas_batch,
                  slice_output):
    w1, b1 = arrays["w1"], arrays["b1"]
    w2, b2 = arrays["w2"], arrays["b2"]
    w3, b3 = arrays["w3"], arrays["b3"]
    w4, b4 = arrays["w4"], arrays["b4"]

    B, in_dim = x.shape
    hid, hid2 = w1.shape[1], w2.shape[1]
    hid3_p, out_p = w3.shape[1], w4.shape[1]
    x = x.astype(jnp.float32)

    # ---- small-batch dispatch: let XLA fuse the four tiny matmuls ----------
    if B < min_pallas_batch:
        h = jnp.maximum(x @ w1 + b1, 0.0)
        h = jnp.maximum(h @ w2 + b2, 0.0)
        h = jnp.maximum(h @ w3 + b3, 0.0)
        y = h @ w4 + b4
        return y[:, :out_dim] if slice_output else y

    # ---- Pallas path --------------------------------------------------------
    if batch_tile is None:
        batch_tile = _auto_batch_tile(B)
    n_tiles = _cdiv(B, batch_tile)
    B_p = n_tiles * batch_tile
    x_p = jnp.pad(x, ((0, B_p - B), (0, 0))) if B_p != B else x

    ordered = [w1, b1, w2, b2, w3, b3, w4, b4]

    def full_block(arr):
        # Grid-invariant whole-array block (always a legal block shape).
        # pl.Buffered(1) deliberately not used: hygiene-only saving; keep
        # lowering maximally robust.
        return pl.BlockSpec(arr.shape, lambda i: (0, 0))

    in_specs = [pl.BlockSpec((batch_tile, in_dim), lambda i: (i, 0))]
    in_specs += [full_block(a) for a in ordered]

    flops = 2 * B_p * (in_dim * hid + hid * hid2 + hid2 * hid3_p
                       + hid3_p * out_p)
    param_bytes = 4 * (in_dim * hid + hid * hid2 + hid2 * hid3_p
                       + hid3_p * out_p + hid + hid2 + hid3_p + out_p)
    cost = pl.CostEstimate(
        flops=flops,
        transcendentals=0,
        bytes_accessed=4 * B_p * (in_dim + out_p) + param_bytes)

    vmem_est = _vmem_bytes_estimate(batch_tile, in_dim, hid, hid2, hid3_p, out_p)
    vmem_limit = None
    if vmem_est > 12 * 1024 * 1024:   # only needed past v5e's 16 MiB default
        vmem_limit = min(_round_up(int(vmem_est * 3 // 2), 1 << 20), 64 << 20)

    out = pl.pallas_call(
        _mlp_kernel,
        out_shape=jax.ShapeDtypeStruct((B_p, out_p), jnp.float32),
        grid_spec=pltpu.PrefetchScalarGridSpec(
            num_scalar_prefetch=0,
            grid=(n_tiles,),
            in_specs=in_specs,
            out_specs=pl.BlockSpec((batch_tile, out_p), lambda i: (i, 0)),
        ),
        compiler_params=pltpu.CompilerParams(
            # Batch axis is embarrassingly parallel; on v7x this lets both
            # TensorCores take grid steps.  (If profiling ever shows a single
            # busy TC, switch this axis to pltpu.CORE_PARALLEL.)
            dimension_semantics=("parallel",),
            vmem_limit_bytes=vmem_limit,
        ),
        cost_estimate=cost,
    )(x_p, *ordered)

    out = out[:B]
    return out[:, :out_dim] if slice_output else out


def three_layer_forward(x, prep: PreparedParams, *, batch_tile=None,
                        min_pallas_batch=512, slice_output=True):
    """Forward pass of the PyTorch `three_layer` module.

    `prep` comes from `prepare_params` (one-time).  `slice_output=False`
    returns the (B, 128)-lane-padded output so the consumer can avoid the
    post-kernel slice round trip."""
    return _forward_impl(x, prep.arrays,
                         out_dim=prep.out_dim,
                         batch_tile=batch_tile,
                         min_pallas_batch=min_pallas_batch,
                         slice_output=slice_output)


# --------------------------------------------------------------------------
# Synthetic init + pure-JAX reference
# --------------------------------------------------------------------------
def init_params(key, in_, out_, hid=64, hid2=32, hid3=100):
    """Deterministic synthetic init.  Weights stored as (in, out) (torch
    weight.T); the extra fcXX_b Parameters are zeros, matching torch.zeros."""
    dims = [(in_, hid), (hid, hid2), (hid2, hid3), (hid3, out_)]
    params = {}
    keys = jax.random.split(key, 2 * len(dims))
    for idx, (fan_in, fan_out) in enumerate(dims, start=1):
        kw, kb = keys[2 * (idx - 1)], keys[2 * (idx - 1) + 1]
        scale = 1.0 / jnp.sqrt(jnp.float32(fan_in))
        params[f"w{idx}"] = (jax.random.normal(kw, (fan_in, fan_out),
                                               jnp.float32) * scale)
        params[f"b{idx}"] = (jax.random.normal(kb, (fan_out,),
                                               jnp.float32) * scale)
        params[f"eb{idx}"] = jnp.zeros((fan_out,), jnp.float32)
    return params


def reference_forward_f32(x, params):
    """Full-precision pure-JAX reference of the original PyTorch semantics."""
    hi = jax.lax.Precision.HIGHEST
    h = x
    for i in range(1, 4):
        h = jnp.maximum(jnp.dot(h, params[f"w{i}"], precision=hi)
                        + params[f"b{i}"] + params[f"eb{i}"], 0.0)
    return (jnp.dot(h, params["w4"], precision=hi)
            + params["b4"] + params["eb4"])


# --------------------------------------------------------------------------
if __name__ == "__main__":
    key = jax.random.PRNGKey(0)
    k_x, k_p = jax.random.split(key)

    # Module defaults: in=16, hid=64, hid2=32, hid3=100, out=10.
    B, IN, OUT = 512, 16, 10
    x = jax.random.normal(k_x, (B, IN), jnp.float32)
    params = init_params(k_p, IN, OUT, hid=64, hid2=32, hid3=100)

    prep = prepare_params(params)   # one-time: fold biases, pad, layout

    # Pallas path: auto tile -> 128 rows/tile, grid = 4 (>= 2 steps per v7x TC).
    out = three_layer_forward(x, prep, min_pallas_batch=256)
    out = jax.block_until_ready(out)
    assert out.shape == (B, OUT), out.shape

    ref = reference_forward_f32(x, params)
    assert jnp.allclose(out, ref, atol=2e-2, rtol=2e-2), \
        ("max abs diff", float(jnp.max(jnp.abs(out - ref))))

    # Small-batch dispatch path (pure-JAX fallback) sanity check.
    out_small = jax.block_until_ready(three_layer_forward(x[:8], prep))
    assert out_small.shape == (8, OUT)
    assert jnp.allclose(out_small, ref[:8], atol=2e-2, rtol=2e-2)

    print("KERNEL_OK")
</pallas_src>

<mosaic_0001>
module attributes {stable_mosaic.version = 11 : i64} {
  func.func @_mlp_kernel(%arg0: i32, %arg1: memref<128x16xf32, #tpu.memory_space<vmem>>, %arg2: memref<16x64xf32, #tpu.memory_space<vmem>>, %arg3: memref<1x64xf32, #tpu.memory_space<vmem>>, %arg4: memref<64x32xf32, #tpu.memory_space<vmem>>, %arg5: memref<1x32xf32, #tpu.memory_space<vmem>>, %arg6: memref<32x128xf32, #tpu.memory_space<vmem>>, %arg7: memref<1x128xf32, #tpu.memory_space<vmem>>, %arg8: memref<128x128xf32, #tpu.memory_space<vmem>>, %arg9: memref<1x128xf32, #tpu.memory_space<vmem>>, %arg10: memref<128x128xf32, #tpu.memory_space<vmem>>) attributes {dimension_semantics = [#tpu.dimension_semantics<parallel>], iteration_bounds = array<i64: 4>, scalar_prefetch = 0 : i64, scratch_operands = 0 : i64, tpu.core_type = #tpu.core_type<tc>, window_params = [{transform_indices = @transform_0, window_bounds = array<i64: 128, 16>}, {pipeline_mode = #tpu.pipeline_mode<synchronous>, transform_indices = @transform_1, window_bounds = array<i64: 16, 64>}, {pipeline_mode = #tpu.pipeline_mode<synchronous>, transform_indices = @transform_2, window_bounds = array<i64: 1, 64>}, {pipeline_mode = #tpu.pipeline_mode<synchronous>, transform_indices = @transform_3, window_bounds = array<i64: 64, 32>}, {pipeline_mode = #tpu.pipeline_mode<synchronous>, transform_indices = @transform_4, window_bounds = array<i64: 1, 32>}, {pipeline_mode = #tpu.pipeline_mode<synchronous>, transform_indices = @transform_5, window_bounds = array<i64: 32, 128>}, {pipeline_mode = #tpu.pipeline_mode<synchronous>, transform_indices = @transform_6, window_bounds = array<i64: 1, 128>}, {pipeline_mode = #tpu.pipeline_mode<synchronous>, transform_indices = @transform_7, window_bounds = array<i64: 128, 128>}, {pipeline_mode = #tpu.pipeline_mode<synchronous>, transform_indices = @transform_8, window_bounds = array<i64: 1, 128>}, {transform_indices = @transform_9, window_bounds = array<i64: 128, 128>}]} {
    %c0 = arith.constant 0 : index
    %c0_0 = arith.constant 0 : index
    %0 = vector.load %arg1[%c0, %c0_0] : memref<128x16xf32, #tpu.memory_space<vmem>>, vector<128x16xf32>
    %c0_1 = arith.constant 0 : index
    %c0_2 = arith.constant 0 : index
    %1 = vector.load %arg2[%c0_1, %c0_2] : memref<16x64xf32, #tpu.memory_space<vmem>>, vector<16x64xf32>
    %cst = arith.constant dense<0.000000e+00> : vector<128x64xf32>
    %2 = tpu.matmul %0, %1, %cst {dimension_numbers = #tpu.dot_dimension_numbers<[1], [0], [0], [1], [0, 0, 1, 1], [], []>} : vector<128x16xf32>, vector<16x64xf32>, vector<128x64xf32> -> vector<128x64xf32>
    %c0_3 = arith.constant 0 : index
    %c0_4 = arith.constant 0 : index
    %3 = vector.load %arg3[%c0_3, %c0_4] : memref<1x64xf32, #tpu.memory_space<vmem>>, vector<1x64xf32>
    %4 = vector.broadcast %3 : vector<1x64xf32> to vector<128x64xf32>
    %5 = arith.addf %2, %4 : vector<128x64xf32>
    %cst_5 = arith.constant 0.000000e+00 : f32
    %6 = vector.broadcast %cst_5 : f32 to vector<128x64xf32>
    %7 = arith.maximumf %5, %6 : vector<128x64xf32>
    %c0_6 = arith.constant 0 : index
    %c0_7 = arith.constant 0 : index
    %8 = vector.load %arg4[%c0_6, %c0_7] : memref<64x32xf32, #tpu.memory_space<vmem>>, vector<64x32xf32>
    %cst_8 = arith.constant dense<0.000000e+00> : vector<128x32xf32>
    %9 = tpu.matmul %7, %8, %cst_8 {dimension_numbers = #tpu.dot_dimension_numbers<[1], [0], [0], [1], [0, 0, 1, 1], [], []>} : vector<128x64xf32>, vector<64x32xf32>, vector<128x32xf32> -> vector<128x32xf32>
    %c0_9 = arith.constant 0 : index
    %c0_10 = arith.constant 0 : index
    %10 = vector.load %arg5[%c0_9, %c0_10] : memref<1x32xf32, #tpu.memory_space<vmem>>, vector<1x32xf32>
    %11 = vector.broadcast %10 : vector<1x32xf32> to vector<128x32xf32>
    %12 = arith.addf %9, %11 : vector<128x32xf32>
    %cst_11 = arith.constant 0.000000e+00 : f32
    %13 = vector.broadcast %cst_11 : f32 to vector<128x32xf32>
    %14 = arith.maximumf %12, %13 : vector<128x32xf32>
    %c0_12 = arith.constant 0 : index
    %c0_13 = arith.constant 0 : index
    %15 = vector.load %arg6[%c0_12, %c0_13] : memref<32x128xf32, #tpu.memory_space<vmem>>, vector<32x128xf32>
    %cst_14 = arith.constant dense<0.000000e+00> : vector<128x128xf32>
    %16 = tpu.matmul %14, %15, %cst_14 {dimension_numbers = #tpu.dot_dimension_numbers<[1], [0], [0], [1], [0, 0, 1, 1], [], []>} : vector<128x32xf32>, vector<32x128xf32>, vector<128x128xf32> -> vector<128x128xf32>
    %c0_15 = arith.constant 0 : index
    %c0_16 = arith.constant 0 : index
    %17 = vector.load %arg7[%c0_15, %c0_16] : memref<1x128xf32, #tpu.memory_space<vmem>>, vector<1x128xf32>
    %18 = vector.broadcast %17 : vector<1x128xf32> to vector<128x128xf32>
    %19 = arith.addf %16, %18 : vector<128x128xf32>
    %cst_17 = arith.constant 0.000000e+00 : f32
    %20 = vector.broadcast %cst_17 : f32 to vector<128x128xf32>
    %21 = arith.maximumf %19, %20 : vector<128x128xf32>
    %c0_18 = arith.constant 0 : index
    %c0_19 = arith.constant 0 : index
    %22 = vector.load %arg8[%c0_18, %c0_19] : memref<128x128xf32, #tpu.memory_space<vmem>>, vector<128x128xf32>
    %cst_20 = arith.constant dense<0.000000e+00> : vector<128x128xf32>
    %23 = tpu.matmul %21, %22, %cst_20 {dimension_numbers = #tpu.dot_dimension_numbers<[1], [0], [0], [1], [0, 0, 1, 1], [], []>} : vector<128x128xf32>, vector<128x128xf32>, vector<128x128xf32> -> vector<128x128xf32>
    %c0_21 = arith.constant 0 : index
    %c0_22 = arith.constant 0 : index
    %24 = vector.load %arg9[%c0_21, %c0_22] : memref<1x128xf32, #tpu.memory_space<vmem>>, vector<1x128xf32>
    %25 = vector.broadcast %24 : vector<1x128xf32> to vector<128x128xf32>
    %26 = arith.addf %23, %25 : vector<128x128xf32>
    %c0_23 = arith.constant 0 : index
    %c0_24 = arith.constant 0 : index
    %27 = vector.load %arg10[%c0_23, %c0_24] : memref<128x128xf32, #tpu.memory_space<vmem>>, vector<128x128xf32>
    tpu.vector_store %arg10[%c0_23, %c0_24], %26 {strides = array<i32>} : memref<128x128xf32, #tpu.memory_space<vmem>>, vector<128x128xf32>,
    return
  }
  func.func @transform_0(%arg0: i32) -> (i32, i32) {
    %c0_i32 = arith.constant 0 : i32
    %c0_i32_0 = arith.constant 0 : i32
    return %arg0, %c0_i32 : i32, i32
  }
  func.func @transform_1(%arg0: i32) -> (i32, i32) {
    %c0_i32 = arith.constant 0 : i32
    %c0_i32_0 = arith.constant 0 : i32
    %c0_i32_1 = arith.constant 0 : i32
    return %c0_i32, %c0_i32_0 : i32, i32
  }
  func.func @transform_2(%arg0: i32) -> (i32, i32) {
    %c0_i32 = arith.constant 0 : i32
    %c0_i32_0 = arith.constant 0 : i32
    %c0_i32_1 = arith.constant 0 : i32
    return %c0_i32, %c0_i32_0 : i32, i32
  }
  func.func @transform_3(%arg0: i32) -> (i32, i32) {
    %c0_i32 = arith.constant 0 : i32
    %c0_i32_0 = arith.constant 0 : i32
    %c0_i32_1 = arith.constant 0 : i32
    return %c0_i32, %c0_i32_0 : i32, i32
  }
  func.func @transform_4(%arg0: i32) -> (i32, i32) {
    %c0_i32 = arith.constant 0 : i32
    %c0_i32_0 = arith.constant 0 : i32
    %c0_i32_1 = arith.constant 0 : i32
    return %c0_i32, %c0_i32_0 : i32, i32
  }
  func.func @transform_5(%arg0: i32) -> (i32, i32) {
    %c0_i32 = arith.constant 0 : i32
    %c0_i32_0 = arith.constant 0 : i32
    %c0_i32_1 = arith.constant 0 : i32
    return %c0_i32, %c0_i32_0 : i32, i32
  }
  func.func @transform_6(%arg0: i32) -> (i32, i32) {
    %c0_i32 = arith.constant 0 : i32
    %c0_i32_0 = arith.constant 0 : i32
    %c0_i32_1 = arith.constant 0 : i32
    return %c0_i32, %c0_i32_0 : i32, i32
  }
  func.func @transform_7(%arg0: i32) -> (i32, i32) {
    %c0_i32 = arith.constant 0 : i32
    %c0_i32_0 = arith.constant 0 : i32
    %c0_i32_1 = arith.constant 0 : i32
    return %c0_i32, %c0_i32_0 : i32, i32
  }
  func.func @transform_8(%arg0: i32) -> (i32, i32) {
    %c0_i32 = arith.constant 0 : i32
    %c0_i32_0 = arith.constant 0 : i32
    %c0_i32_1 = arith.constant 0 : i32
    return %c0_i32, %c0_i32_0 : i32, i32
  }
  func.func @transform_9(%arg0: i32) -> (i32, i32) {
    %c0_i32 = arith.constant 0 : i32
    %c0_i32_0 = arith.constant 0 : i32
    return %arg0, %c0_i32 : i32, i32
  }
}

</mosaic_0001>

<llo_original>
// kernel: _forward_impl.1
$region0: #{_forward_impl.1}
  #allocation0 [shape = 'u32[]', space=smem, size = 0x4, offset = 0x4, fixed_abs, tag = 'smem constant byte address 0x4 - core index']
  #allocation1 [shape = 'u32[144,128]{1,0:T(1,128)}', space=vmem, size = 0x12000, scoped, tag = 'internal scratch']
  %s0 = inlined_call_operand.vmem [shape: f32[512,16], index: 0, kind: input, shape index: {}]
  %s1 = inlined_call_operand.vmem [shape: f32[16,64], index: 1, kind: input, shape index: {}]
  %s2 = inlined_call_operand.vmem [shape: f32[1,64], index: 2, kind: input, shape index: {}]
  %s3 = inlined_call_operand.vmem [shape: f32[64,32], index: 3, kind: input, shape index: {}]
  %s4 = inlined_call_operand.vmem [shape: f32[1,32], index: 4, kind: input, shape index: {}]
  %s5 = inlined_call_operand.vmem [shape: f32[32,128], index: 5, kind: input, shape index: {}]
  %s6 = inlined_call_operand.vmem [shape: f32[1,128], index: 6, kind: input, shape index: {}]
  %s7 = inlined_call_operand.vmem [shape: f32[128,128], index: 7, kind: input, shape index: {}]
  %s8 = inlined_call_operand.vmem [shape: f32[1,128], index: 8, kind: input, shape index: {}]
  %s9 = inlined_call_operand.vmem [shape: f32[512,128], index: 9, kind: output, shape index: {}]
  %s10 = sld [smem:[#allocation0]]
  $region69: #{_forward_impl.1} parent=0
    _
  %s12 = ssub.s32 1, %s10
  %s13 = scalar_select 0, %s12, %s10
  loop: start=0, step=1, limit=6
  $region2: #{_forward_impl.1} parent=0 // loop_pre_header
    _
  $region3: #{_forward_impl.1} parent=0 // loop_header
    %s15 = sphi 0, %s19
    %p16 = scmp.ge.s32.totalorder %s15, 6
    %s25 = sphi 0, %s27
    %s28 = sphi 0, %s25
    %s29 = sphi 0, %s28
    %s45 = sphi 0, %s29
    %s49 = sphi 0, %s49
    %s51 = sphi 0, %s49
    %s52 = sphi 0, %s51
    %s66 = sphi 0, %s52
    %s70 = sphi 0, %s70
    %s72 = sphi 0, %s70
    %s73 = sphi 0, %s72
    %s87 = sphi 0, %s73
    %s91 = sphi 0, %s91
    %s93 = sphi 0, %s91
    %s94 = sphi 0, %s93
    %s108 = sphi 0, %s94
    %s112 = sphi 0, %s112
    %s114 = sphi 0, %s112
    %s115 = sphi 0, %s114
    %s129 = sphi 0, %s115
    %s133 = sphi 0, %s133
    %s135 = sphi 0, %s133
    %s136 = sphi 0, %s135
    %s150 = sphi 0, %s136
    %s154 = sphi 0, %s154
    %s156 = sphi 0, %s154
    %s157 = sphi 0, %s156
    %s171 = sphi 0, %s157
    %s175 = sphi 0, %s175
    %s177 = sphi 0, %s175
    %s178 = sphi 0, %s177
    %s192 = sphi 0, %s178
    %s196 = sphi 0, %s196
    %s198 = sphi 0, %s196
    %s199 = sphi 0, %s198
    %s213 = sphi 0, %s199
    %s219 = sphi 0, %s221
    %s222 = sphi 0, %s219
    %s223 = sphi 0, %s222
    %s239 = sphi 0, %s223
  $region4: #{_forward_impl.1} parent=0 // loop_header_branch
    %18 = sbr.rel (%p16) target = $region8
  $region5: #{_forward_impl.1} parent=0 // loop_body
    %s20 = ssub.s32 %s15, 1
    %s21 = ssub.s32 %s15, 2
    %s22 = sadd.s32 %s15, 1
    %s23 = ssub.s32 %s15, %s22
    %p24 = scmp.eq.s32.totalorder %s23, 0
    %s26 = sadd.s32 %s25, 1
    %s27 = scalar_select %p24, %s25, %s26
    %p30 = pneg %p24
    %p31 = scmp.eq.s32.totalorder %s15, 3
    %p32 = por %p30, %p31
    %p33 = scmp.ne.s32.totalorder %s25, %s28
    %p34 = scmp.eq.s32.totalorder %s15, 0
    %p35 = por %p33, %p34
    %p36 = scmp.ne.s32.totalorder %s25, %s28
    %p37 = scmp.eq.s32.totalorder %s20, 3
    %p38 = por %p36, %p37
    %p39 = scmp.ne.s32.totalorder %s28, %s29
    %p40 = scmp.eq.s32.totalorder %s20, 0
    %p41 = por %p39, %p40
    %p42 = scmp.ne.s32.totalorder %s28, %s29
    %p43 = scmp.eq.s32.totalorder %s21, 3
    %p44 = por %p42, %p43
    %p46 = scmp.ne.s32.totalorder %s29, %s45
    %p47 = scmp.eq.s32.totalorder %s21, 0
    %p48 = por %p46, %p47
    %s50 = sadd.s32 %s49, 1
    %p53 = scmp.eq.s32.totalorder %s15, 3
    %p54 = scmp.ne.s32.totalorder %s49, %s51
    %p55 = scmp.eq.s32.totalorder %s15, 0
    %p56 = por %p54, %p55
    %p57 = scmp.ne.s32.totalorder %s49, %s51
    %p58 = scmp.eq.s32.totalorder %s20, 3
    %p59 = por %p57, %p58
    %p60 = scmp.ne.s32.totalorder %s51, %s52
    %p61 = scmp.eq.s32.totalorder %s20, 0
    %p62 = por %p60, %p61
    %p63 = scmp.ne.s32.totalorder %s51, %s52
    %p64 = scmp.eq.s32.totalorder %s21, 3
    %p65 = por %p63, %p64
    %p67 = scmp.ne.s32.totalorder %s52, %s66
    %p68 = scmp.eq.s32.totalorder %s21, 0
    %p69 = por %p67, %p68
    %s71 = sadd.s32 %s70, 1
    %p74 = scmp.eq.s32.totalorder %s15, 3
    %p75 = scmp.ne.s32.totalorder %s70, %s72
    %p76 = scmp.eq.s32.totalorder %s15, 0
    %p77 = por %p75, %p76
    %p78 = scmp.ne.s32.totalorder %s70, %s72
    %p79 = scmp.eq.s32.totalorder %s20, 3
    %p80 = por %p78, %p79
    %p81 = scmp.ne.s32.totalorder %s72, %s73
    %p82 = scmp.eq.s32.totalorder %s20, 0
    %p83 = por %p81, %p82
    %p84 = scmp.ne.s32.totalorder %s72, %s73
    %p85 = scmp.eq.s32.totalorder %s21, 3
    %p86 = por %p84, %p85
    %p88 = scmp.ne.s32.totalorder %s73, %s87
    %p89 = scmp.eq.s32.totalorder %s21, 0
    %p90 = por %p88, %p89
    %s92 = sadd.s32 %s91, 1
    %p95 = scmp.eq.s32.totalorder %s15, 3
    %p96 = scmp.ne.s32.totalorder %s91, %s93
    %p97 = scmp.eq.s32.totalorder %s15, 0
    %p98 = por %p96, %p97
    %p99 = scmp.ne.s32.totalorder %s91, %s93
    %p100 = scmp.eq.s32.totalorder %s20, 3
    %p101 = por %p99, %p100
    %p102 = scmp.ne.s32.totalorder %s93, %s94
    %p103 = scmp.eq.s32.totalorder %s20, 0
    %p104 = por %p102, %p103
    %p105 = scmp.ne.s32.totalorder %s93, %s94
    %p106 = scmp.eq.s32.totalorder %s21, 3
    %p107 = por %p105, %p106
    %p109 = scmp.ne.s32.totalorder %s94, %s108
    %p110 = scmp.eq.s32.totalorder %s21, 0
    %p111 = por %p109, %p110
    %s113 = sadd.s32 %s112, 1
    %p116 = scmp.eq.s32.totalorder %s15, 3
    %p117 = scmp.ne.s32.totalorder %s112, %s114
    %p118 = scmp.eq.s32.totalorder %s15, 0
    %p119 = por %p117, %p118
    %p120 = scmp.ne.s32.totalorder %s112, %s114
    %p121 = scmp.eq.s32.totalorder %s20, 3
    %p122 = por %p120, %p121
    %p123 = scmp.ne.s32.totalorder %s114, %s115
    %p124 = scmp.eq.s32.totalorder %s20, 0
    %p125 = por %p123, %p124
    %p126 = scmp.ne.s32.totalorder %s114, %s115
    %p127 = scmp.eq.s32.totalorder %s21, 3
    %p128 = por %p126, %p127
    %p130 = scmp.ne.s32.totalorder %s115, %s129
    %p131 = scmp.eq.s32.totalorder %s21, 0
    %p132 = por %p130, %p131
    %s134 = sadd.s32 %s133, 1
    %p137 = scmp.eq.s32.totalorder %s15, 3
    %p138 = scmp.ne.s32.totalorder %s133, %s135
    %p139 = scmp.eq.s32.totalorder %s15, 0
    %p140 = por %p138, %p139
    %p141 = scmp.ne.s32.totalorder %s133, %s135
    %p142 = scmp.eq.s32.totalorder %s20, 3
    %p143 = por %p141, %p142
    %p144 = scmp.ne.s32.totalorder %s135, %s136
    %p145 = scmp.eq.s32.totalorder %s20, 0
    %p146 = por %p144, %p145
    %p147 = scmp.ne.s32.totalorder %s135, %s136
    %p148 = scmp.eq.s32.totalorder %s21, 3
    %p149 = por %p147, %p148
    %p151 = scmp.ne.s32.totalorder %s136, %s150
    %p152 = scmp.eq.s32.totalorder %s21, 0
    %p153 = por %p151, %p152
    %s155 = sadd.s32 %s154, 1
    %p158 = scmp.eq.s32.totalorder %s15, 3
    %p159 = scmp.ne.s32.totalorder %s154, %s156
    %p160 = scmp.eq.s32.totalorder %s15, 0
    %p161 = por %p159, %p160
    %p162 = scmp.ne.s32.totalorder %s154, %s156
    %p163 = scmp.eq.s32.totalorder %s20, 3
    %p164 = por %p162, %p163
    %p165 = scmp.ne.s32.totalorder %s156, %s157
    %p166 = scmp.eq.s32.totalorder %s20, 0
    %p167 = por %p165, %p166
    %p168 = scmp.ne.s32.totalorder %s156, %s157
    %p169 = scmp.eq.s32.totalorder %s21, 3
    %p170 = por %p168, %p169
    %p172 = scmp.ne.s32.totalorder %s157, %s171
    %p173 = scmp.eq.s32.totalorder %s21, 0
    %p174 = por %p172, %p173
    %s176 = sadd.s32 %s175, 1
    %p179 = scmp.eq.s32.totalorder %s15, 3
    %p180 = scmp.ne.s32.totalorder %s175, %s177
    %p181 = scmp.eq.s32.totalorder %s15, 0
    %p182 = por %p180, %p181
    %p183 = scmp.ne.s32.totalorder %s175, %s177
    %p184 = scmp.eq.s32.totalorder %s20, 3
    %p185 = por %p183, %p184
    %p186 = scmp.ne.s32.totalorder %s177, %s178
    %p187 = scmp.eq.s32.totalorder %s20, 0
    %p188 = por %p186, %p187
    %p189 = scmp.ne.s32.totalorder %s177, %s178
    %p190 = scmp.eq.s32.totalorder %s21, 3
    %p191 = por %p189, %p190
    %p193 = scmp.ne.s32.totalorder %s178, %s192
    %p194 = scmp.eq.s32.totalorder %s21, 0
    %p195 = por %p193, %p194
    %s197 = sadd.s32 %s196, 1
    %p200 = scmp.eq.s32.totalorder %s15, 3
    %p201 = scmp.ne.s32.totalorder %s196, %s198
    %p202 = scmp.eq.s32.totalorder %s15, 0
    %p203 = por %p201, %p202
    %p204 = scmp.ne.s32.totalorder %s196, %s198
    %p205 = scmp.eq.s32.totalorder %s20, 3
    %p206 = por %p204, %p205
    %p207 = scmp.ne.s32.totalorder %s198, %s199
    %p208 = scmp.eq.s32.totalorder %s20, 0
    %p209 = por %p207, %p208
    %p210 = scmp.ne.s32.totalorder %s198, %s199
    %p211 = scmp.eq.s32.totalorder %s21, 3
    %p212 = por %p210, %p211
    %p214 = scmp.ne.s32.totalorder %s199, %s213
    %p215 = scmp.eq.s32.totalorder %s21, 0
    %p216 = por %p214, %p215
    %s217 = ssub.s32 %s15, %s22
    %p218 = scmp.eq.s32.totalorder %s217, 0
    %s220 = sadd.s32 %s219, 1
    %s221 = scalar_select %p218, %s219, %s220
    %p224 = pneg %p218
    %p225 = scmp.eq.s32.totalorder %s15, 3
    %p226 = por %p224, %p225
    %p227 = scmp.ne.s32.totalorder %s219, %s222
    %p228 = scmp.eq.s32.totalorder %s15, 0
    %p229 = por %p227, %p228
    %p230 = scmp.ne.s32.totalorder %s219, %s222
    %p231 = scmp.eq.s32.totalorder %s20, 3
    %p232 = por %p230, %p231
    %p233 = scmp.ne.s32.totalorder %s222, %s223
    %p234 = scmp.eq.s32.totalorder %s20, 0
    %p235 = por %p233, %p234
    %p236 = scmp.ne.s32.totalorder %s222, %s223
    %p237 = scmp.eq.s32.totalorder %s21, 3
    %p238 = por %p236, %p237
    %p240 = scmp.ne.s32.totalorder %s223, %s239
    %p241 = scmp.eq.s32.totalorder %s21, 0
    %p242 = por %p240, %p241
    %p243 = scmp.le.s32.totalorder 1, %s15
    %p244 = scmp.lt.s32.totalorder %s15, 5
    %p245 = pnand %p243, %p244
    %p246 = pneg %p245
    // Predicated region
    $region9: #{_forward_impl.1} parent=5 // pred_check
      _
    $region10: #{_forward_impl.1} parent=5 // pred_check_branch
      %248 = sbr.rel (%p245) target = $region12
    $region11: #{_forward_impl.1} parent=5 // pred_region
      %s249 = ssub.s32 %s15, 1
      // Predicated region
      $region13: #{_forward_impl.1} parent=11 // pred_check
        %p250 = pneg %p62
      $region14: #{_forward_impl.1} parent=11 // pred_check_branch
        %252 = sbr.rel (%p250) target = $region16
      $region15: #{_forward_impl.1} parent=11 // pred_region
        _
      $region16: #{_forward_impl.1} parent=11 // pred_fallthru
        _
      // Predicated region
      $region17: #{_forward_impl.1} parent=11 // pred_check
        %p253 = pneg %p83
      $region18: #{_forward_impl.1} parent=11 // pred_check_branch
        %255 = sbr.rel (%p253) target = $region20
      $region19: #{_forward_impl.1} parent=11 // pred_region
        _
      $region20: #{_forward_impl.1} parent=11 // pred_fallthru
        _
      // Predicated region
      $region21: #{_forward_impl.1} parent=11 // pred_check
        %p256 = pneg %p104
      $region22: #{_forward_impl.1} parent=11 // pred_check_branch
        %258 = sbr.rel (%p256) target = $region24
      $region23: #{_forward_impl.1} parent=11 // pred_region
        _
      $region24: #{_forward_impl.1} parent=11 // pred_fallthru
        _
      // Predicated region
      $region25: #{_forward_impl.1} parent=11 // pred_check
        %p259 = pneg %p125
      $region26: #{_forward_impl.1} parent=11 // pred_check_branch
        %261 = sbr.rel (%p259) target = $region28
      $region27: #{_forward_impl.1} parent=11 // pred_region
        _
      $region28: #{_forward_impl.1} parent=11 // pred_fallthru
        _
      // Predicated region
      $region29: #{_forward_impl.1} parent=11 // pred_check
        %p262 = pneg %p146
      $region30: #{_forward_impl.1} parent=11 // pred_check_branch
        %264 = sbr.rel (%p262) target = $region32
      $region31: #{_forward_impl.1} parent=11 // pred_region
        _
      $region32: #{_forward_impl.1} parent=11 // pred_fallthru
        _
      // Predicated region
      $region33: #{_forward_impl.1} parent=11 // pred_check
        %p265 = pneg %p167
      $region34: #{_forward_impl.1} parent=11 // pred_check_branch
        %267 = sbr.rel (%p265) target = $region36
      $region35: #{_forward_impl.1} parent=11 // pred_region
        _
      $region36: #{_forward_impl.1} parent=11 // pred_fallthru
        _
      // Predicated region
      $region37: #{_forward_impl.1} parent=11 // pred_check
        %p268 = pneg %p188
      $region38: #{_forward_impl.1} parent=11 // pred_check_branch
        %270 = sbr.rel (%p268) target = $region40
      $region39: #{_forward_impl.1} parent=11 // pred_region
        _
      $region40: #{_forward_impl.1} parent=11 // pred_fallthru
        _
      // Predicated region
      $region41: #{_forward_impl.1} parent=11 // pred_check
        %p271 = pneg %p209
      $region42: #{_forward_impl.1} parent=11 // pred_check_branch
        %273 = sbr.rel (%p271) target = $region44
      $region43: #{_forward_impl.1} parent=11 // pred_region
        _
      $region44: #{_forward_impl.1} parent=11 // pred_fallthru
        _
    $region12: #{_forward_impl.1} parent=5 // pred_fallthru
      _
    %p274 = scmp.lt.s32.totalorder %s15, 4
    // Predicated region
    $region45: #{_forward_impl.1} parent=5 // pred_check
      %p275 = pneg %p274
    $region46: #{_forward_impl.1} parent=5 // pred_check_branch
      %277 = sbr.rel (%p275) target = $region48
    $region47: #{_forward_impl.1} parent=5 // pred_region
      // Predicated region
      $region49: #{_forward_impl.1} parent=47 // pred_check
        %p278 = pneg %p35
      $region50: #{_forward_impl.1} parent=47 // pred_check_branch
        %280 = sbr.rel (%p278) target = $region52
      $region51: #{_forward_impl.1} parent=47 // pred_region
        %s281 = smul.u32 16, %s15
        %p282 = scmp.lt.s32.totalorder %s281, 63
        %s283 = scalar_select %p282, %s281, 63
        %s284 = smul.addr %s283, 8
        %s285 = scalar_lea.vmem %s0, %s284
        %s286 = smul.u32 16, %s15
      $region52: #{_forward_impl.1} parent=47 // pred_fallthru
        _
    $region48: #{_forward_impl.1} parent=5 // pred_fallthru
      _
    %p287 = scmp.le.s32.totalorder 1, %s15
    %p288 = scmp.lt.s32.totalorder %s15, 5
    %p289 = pnand %p287, %p288
    %p290 = pneg %p289
    // Predicated region
    $region53: #{_forward_impl.1} parent=5 // pred_check
      _
    $region54: #{_forward_impl.1} parent=5 // pred_check_branch
      %292 = sbr.rel (%p289) target = $region56
    $region55: #{_forward_impl.1} parent=5 // pred_region
      %s293 = ssub.s32 %s15, 1
      %s294 = smul.u32 16, %s20
      %p295 = scmp.lt.s32.totalorder %s294, 63
      %s296 = scalar_select %p295, %s294, 63
      %s297 = smul.addr %s296, 8
      %s298 = scalar_lea.vmem %s0, %s297
      %p299 = pneg %p41
      %p300 = pneg %p38
      %p301 = pneg %p62
      %p302 = pneg %p59
      %p303 = pneg %p83
      %p304 = pneg %p80
      %p305 = pneg %p104
      %p306 = pneg %p101
      %p307 = pneg %p125
      %p308 = pneg %p122
      %p309 = pneg %p146
      %p310 = pneg %p143
      %p311 = pneg %p167
      %p312 = pneg %p164
      %p313 = pneg %p188
      %p314 = pneg %p185
      %p315 = pneg %p209
      %p316 = pneg %p206
      %p317 = pneg %p235
      %p318 = pneg %p232
      %s319 = smul.u32 16, %s20
      %p320 = scmp.lt.s32.totalorder %s319, 63
      %s321 = scalar_select %p320, %s319, 63
      %s322 = smul.addr %s321, 8
      %s323 = scalar_lea.vmem %s9, %s322
      %s324 = smul.u32 16, %s20
      %p325 = scmp.lt.s32.totalorder %s324, 63
      %s326 = scalar_select %p325, %s324, 63
      %s327 = smul.addr %s326, 8
      %s328 = scalar_lea.vmem %s0, %s327
      %s329 = smul.u32 16, %s20
      %s330 = smul.u32 16, %s20
      %p331 = scmp.lt.s32.totalorder %s330, 63
      %s332 = scalar_select %p331, %s330, 63
      %s333 = smul.addr %s332, 8
      %s334 = scalar_lea.vmem %s9, %s333
      %s335 = smul.u32 16, %s20
      %v336 = vld [vmem:[%s328] sm:$0xff]
      %v337 = vld [vmem:[%s328 + $0x8] sm:$0xff]
      %v338 = vld [vmem:[%s328 + $0x10] sm:$0xff]
      %v339 = vld [vmem:[%s328 + $0x18] sm:$0xff]
      %v340 = vld [vmem:[%s328 + $0x20] sm:$0xff]
      %v341 = vld [vmem:[%s328 + $0x28] sm:$0xff]
      %v342 = vld [vmem:[%s328 + $0x30] sm:$0xff]
      %v343 = vld [vmem:[%s328 + $0x38] sm:$0xff]
      %v344 = vld [vmem:[%s328 + $0x40] sm:$0xff]
      %v345 = vld [vmem:[%s328 + $0x48] sm:$0xff]
      %v346 = vld [vmem:[%s328 + $0x50] sm:$0xff]
      %v347 = vld [vmem:[%s328 + $0x58] sm:$0xff]
      %v348 = vld [vmem:[%s328 + $0x60] sm:$0xff]
      %v349 = vld [vmem:[%s328 + $0x68] sm:$0xff]
      %v350 = vld [vmem:[%s328 + $0x70] sm:$0xff]
      %v351 = vld [vmem:[%s328 + $0x78] sm:$0xff]
      %v352 = vld [vmem:[%s1] sm:$0xff]
      %v353 = vld [vmem:[%s1 + $0x8] sm:$0xff]
      %v354 = vld [vmem:[%s2] sm:$0x1]
      %v356 = vlaneseq
      %v357 = vshrl.u32 %v356, 7
      %v358 = vsub.s32 0, %v357
      %v359 = vrot.slane %v354, %v358
      %vm361 = vcmask 130048
      %v363 = vsel %vm361, %v336, 0
      %v366 = vsel %vm361, %v337, 0
      %v369 = vsel %vm361, %v338, 0
      %v372 = vsel %vm361, %v339, 0
      %v375 = vsel %vm361, %v340, 0
      %v378 = vsel %vm361, %v341, 0
      %v381 = vsel %vm361, %v342, 0
      %v384 = vsel %vm361, %v343, 0
      %v387 = vsel %vm361, %v344, 0
      %v390 = vsel %vm361, %v345, 0
      %v393 = vsel %vm361, %v346, 0
      %v396 = vsel %vm361, %v347, 0
      %v399 = vsel %vm361, %v348, 0
      %v402 = vsel %vm361, %v349, 0
      %v405 = vsel %vm361, %v350, 0
      %v408 = vsel %vm361, %v351, 0
      %410 = vmatprep.subr.mxu0 0.0
      %411 = vmatpush1.msra.mxu0 0.0
      %412 = vmatprep.subr.mxu0 0.0
      %413 = vmatpush1.msra.mxu0 0.0
      %414 = vmatprep.subr.mxu0 0.0
      %415 = vmatpush1.msra.mxu0 0.0
      %416 = vmatprep.subr.mxu0 0.0
      %417 = vmatpush1.msra.mxu0 0.0
      %418 = vmatprep.subr.mxu0 0.0
      %419 = vmatpush1.msra.mxu0 0.0
      %420 = vmatprep.subr.mxu0 0.0
      %421 = vmatpush1.msra.mxu0 0.0
      %422 = vmatprep.subr.mxu0 0.0
      %423 = vmatpush1.msra.mxu0 0.0
      %424 = vmatprep.subr.mxu0 0.0
      %425 = vmatpush1.msra.mxu0 0.0
      %426 = vmatprep.subr.mxu0 0.0
      %427 = vmatpush1.msra.mxu0 0.0
      %428 = vmatprep.subr.mxu0 0.0
      %429 = vmatpush1.msra.mxu0 0.0
      %430 = vmatprep.subr.mxu0 0.0
      %431 = vmatpush1.msra.mxu0 0.0
      %432 = vmatprep.subr.mxu0 0.0
      %433 = vmatpush1.msra.mxu0 0.0
      %434 = vmatprep.subr.mxu0 0.0
      %435 = vmatpush1.msra.mxu0 0.0
      %436 = vmatprep.subr.mxu0 0.0
      %437 = vmatpush1.msra.mxu0 0.0
      %438 = vmatprep.subr.mxu0 0.0
      %439 = vmatpush1.msra.mxu0 %v353
      %440 = vmatprep.subr.mxu0 0.0
      %441 = vmatpush1.msra.mxu0 %v352
      %442 = vmatprep.subr.mxu0 0.0
      %443 = vmatpush2.msra.mxu0 0.0
      %444 = vmatprep.subr.mxu0 0.0
      %445 = vmatpush2.msra.mxu0 0.0
      %446 = vmatprep.subr.mxu0 0.0
      %447 = vmatpush2.msra.mxu0 0.0
      %448 = vmatprep.subr.mxu0 0.0
      %449 = vmatpush2.msra.mxu0 0.0
      %450 = vmatprep.subr.mxu0 0.0
      %451 = vmatpush2.msra.mxu0 0.0
      %452 = vmatprep.subr.mxu0 0.0
      %453 = vmatpush2.msra.mxu0 0.0
      %454 = vmatprep.subr.mxu0 0.0
      %455 = vmatpush2.msra.mxu0 0.0
      %456 = vmatprep.subr.mxu0 0.0
      %457 = vmatpush2.msra.mxu0 0.0
      %458 = vmatprep.subr.mxu0 0.0
      %459 = vmatpush2.msra.mxu0 0.0
      %460 = vmatprep.subr.mxu0 0.0
      %461 = vmatpush2.msra.mxu0 0.0
      %462 = vmatprep.subr.mxu0 0.0
      %463 = vmatpush2.msra.mxu0 0.0
      %464 = vmatprep.subr.mxu0 0.0
      %465 = vmatpush2.msra.mxu0 0.0
      %466 = vmatprep.subr.mxu0 0.0
      %467 = vmatpush2.msra.mxu0 0.0
      %468 = vmatprep.subr.mxu0 0.0
      %469 = vmatpush2.msra.mxu0 0.0
      %470 = vmatprep.subr.mxu0 0.0
      %471 = vmatpush2.msra.mxu0 0.0
      %472 = vmatprep.subr.mxu0 0.0
      %473 = vmatpush2.msra.mxu0 0.0
      %474 = vmatprep.mubr.f32.mxu0 0.0
      %475 = vmatmul.mubr.f32.gmra.mxu0 %v363
      %v476 = vpop.f32.mrf.mxu0
      %v477 = vadd.f32 %v359, %v476
      %v478 = vpop.f32.mrf.mxu0
      %479 = vmatprep.mubr.f32.mxu0 0.0
      %480 = vmatmul.mubr.f32.gmra.mxu0 %v366
      %v481 = vpop.f32.mrf.mxu0
      %v482 = vadd.f32 %v359, %v481
      %v483 = vpop.f32.mrf.mxu0
      %484 = vmatprep.mubr.f32.mxu0 0.0
      %485 = vmatmul.mubr.f32.gmra.mxu0 %v369
      %v486 = vpop.f32.mrf.mxu0
      %v487 = vadd.f32 %v359, %v486
      %v488 = vpop.f32.mrf.mxu0
      %489 = vmatprep.mubr.f32.mxu0 0.0
      %490 = vmatmul.mubr.f32.gmra.mxu0 %v372
      %v491 = vpop.f32.mrf.mxu0
      %v492 = vadd.f32 %v359, %v491
      %v493 = vpop.f32.mrf.mxu0
      %494 = vmatprep.mubr.f32.mxu0 0.0
      %495 = vmatmul.mubr.f32.gmra.mxu0 %v375
      %v496 = vpop.f32.mrf.mxu0
      %v497 = vadd.f32 %v359, %v496
      %v498 = vpop.f32.mrf.mxu0
      %499 = vmatprep.mubr.f32.mxu0 0.0
      %500 = vmatmul.mubr.f32.gmra.mxu0 %v378
      %v501 = vpop.f32.mrf.mxu0
      %v502 = vadd.f32 %v359, %v501
      %v503 = vpop.f32.mrf.mxu0
      %504 = vmatprep.mubr.f32.mxu0 0.0
      %505 = vmatmul.mubr.f32.gmra.mxu0 %v381
      %v506 = vpop.f32.mrf.mxu0
      %v507 = vadd.f32 %v359, %v506
      %v508 = vpop.f32.mrf.mxu0
      %509 = vmatprep.mubr.f32.mxu0 0.0
      %510 = vmatmul.mubr.f32.gmra.mxu0 %v384
      %v511 = vpop.f32.mrf.mxu0
      %v512 = vadd.f32 %v359, %v511
      %v513 = vpop.f32.mrf.mxu0
      %514 = vmatprep.mubr.f32.mxu0 0.0
      %515 = vmatmul.mubr.f32.gmra.mxu0 %v387
      %v516 = vpop.f32.mrf.mxu0
      %v517 = vadd.f32 %v359, %v516
      %v518 = vpop.f32.mrf.mxu0
      %519 = vmatprep.mubr.f32.mxu0 0.0
      %520 = vmatmul.mubr.f32.gmra.mxu0 %v390
      %v521 = vpop.f32.mrf.mxu0
      %v522 = vadd.f32 %v359, %v521
      %v523 = vpop.f32.mrf.mxu0
      %524 = vmatprep.mubr.f32.mxu0 0.0
      %525 = vmatmul.mubr.f32.gmra.mxu0 %v393
      %v526 = vpop.f32.mrf.mxu0
      %v527 = vadd.f32 %v359, %v526
      %v528 = vpop.f32.mrf.mxu0
      %529 = vmatprep.mubr.f32.mxu0 0.0
      %530 = vmatmul.mubr.f32.gmra.mxu0 %v396
      %v531 = vpop.f32.mrf.mxu0
      %v532 = vadd.f32 %v359, %v531
      %v533 = vpop.f32.mrf.mxu0
      %534 = vmatprep.mubr.f32.mxu0 0.0
      %535 = vmatmul.mubr.f32.gmra.mxu0 %v399
      %v536 = vpop.f32.mrf.mxu0
      %v537 = vadd.f32 %v359, %v536
      %v538 = vpop.f32.mrf.mxu0
      %539 = vmatprep.mubr.f32.mxu0 0.0
      %540 = vmatmul.mubr.f32.gmra.mxu0 %v402
      %v541 = vpop.f32.mrf.mxu0
      %v542 = vadd.f32 %v359, %v541
      %v543 = vpop.f32.mrf.mxu0
      %544 = vmatprep.mubr.f32.mxu0 0.0
      %545 = vmatmul.mubr.f32.gmra.mxu0 %v405
      %v546 = vpop.f32.mrf.mxu0
      %v547 = vadd.f32 %v359, %v546
      %v548 = vpop.f32.mrf.mxu0
      %549 = vmatprep.mubr.f32.mxu0 0.0
      %550 = vmatmul.mubr.f32.gmra.mxu0 %v408
      %v551 = vpop.f32.mrf.mxu0
      %v552 = vadd.f32 %v359, %v551
      %v553 = vpop.f32.mrf.mxu0
      %554 = vdwg.mxu0
      %v555 = vmax.f32 %v477, 0.0
      %v556 = vmax.f32 %v482, 0.0
      %v557 = vmax.f32 %v487, 0.0
      %v558 = vmax.f32 %v492, 0.0
      %v559 = vmax.f32 %v497, 0.0
      %v560 = vmax.f32 %v502, 0.0
      %v561 = vmax.f32 %v507, 0.0
      %v562 = vmax.f32 %v512, 0.0
      %v563 = vmax.f32 %v517, 0.0
      %v564 = vmax.f32 %v522, 0.0
      %v565 = vmax.f32 %v527, 0.0
      %v566 = vmax.f32 %v532, 0.0
      %v567 = vmax.f32 %v537, 0.0
      %v568 = vmax.f32 %v542, 0.0
      %v569 = vmax.f32 %v547, 0.0
      %v570 = vmax.f32 %v552, 0.0
      %v571 = vld [vmem:[%s3] sm:$0xff]
      %v572 = vld [vmem:[%s3 + $0x8] sm:$0xff]
      %v573 = vld [vmem:[%s3 + $0x10] sm:$0xff]
      %v574 = vld [vmem:[%s3 + $0x18] sm:$0xff]
      %v575 = vld [vmem:[%s3 + $0x20] sm:$0xff]
      %v576 = vld [vmem:[%s3 + $0x28] sm:$0xff]
      %v577 = vld [vmem:[%s3 + $0x30] sm:$0xff]
      %v578 = vld [vmem:[%s3 + $0x38] sm:$0xff]
      %v579 = vld [vmem:[%s4] sm:$0x1]
      %v581 = vlaneseq
      %v582 = vshrl.u32 %v581, 7
      %v583 = vsub.s32 0, %v582
      %v584 = vrot.slane %v579, %v583
      %vm586 = vcmask 523264
      %v588 = vsel %vm586, %v555, 0
      %v591 = vsel %vm586, %v556, 0
      %v594 = vsel %vm586, %v557, 0
      %v597 = vsel %vm586, %v558, 0
      %v600 = vsel %vm586, %v559, 0
      %v603 = vsel %vm586, %v560, 0
      %v606 = vsel %vm586, %v561, 0
      %v609 = vsel %vm586, %v562, 0
      %v612 = vsel %vm586, %v563, 0
      %v615 = vsel %vm586, %v564, 0
      %v618 = vsel %vm586, %v565, 0
      %v621 = vsel %vm586, %v566, 0
      %v624 = vsel %vm586, %v567, 0
      %v627 = vsel %vm586, %v568, 0
      %v630 = vsel %vm586, %v569, 0
      %v633 = vsel %vm586, %v570, 0
      %635 = vmatprep.subr.mxu0 0.0
      %636 = vmatpush1.msra.mxu0 0.0
      %637 = vmatprep.subr.mxu0 0.0
      %638 = vmatpush1.msra.mxu0 0.0
      %639 = vmatprep.subr.mxu0 0.0
      %640 = vmatpush1.msra.mxu0 0.0
      %641 = vmatprep.subr.mxu0 0.0
      %642 = vmatpush1.msra.mxu0 0.0
      %643 = vmatprep.subr.mxu0 0.0
      %644 = vmatpush1.msra.mxu0 0.0
      %645 = vmatprep.subr.mxu0 0.0
      %646 = vmatpush1.msra.mxu0 0.0
      %647 = vmatprep.subr.mxu0 0.0
      %648 = vmatpush1.msra.mxu0 0.0
      %649 = vmatprep.subr.mxu0 0.0
      %650 = vmatpush1.msra.mxu0 0.0
      %651 = vmatprep.subr.mxu0 0.0
      %652 = vmatpush1.msra.mxu0 %v578
      %653 = vmatprep.subr.mxu0 0.0
      %654 = vmatpush1.msra.mxu0 %v577
      %655 = vmatprep.subr.mxu0 0.0
      %656 = vmatpush1.msra.mxu0 %v576
      %657 = vmatprep.subr.mxu0 0.0
      %658 = vmatpush1.msra.mxu0 %v575
      %659 = vmatprep.subr.mxu0 0.0
      %660 = vmatpush1.msra.mxu0 %v574
      %661 = vmatprep.subr.mxu0 0.0
      %662 = vmatpush1.msra.mxu0 %v573
      %663 = vmatprep.subr.mxu0 0.0
      %664 = vmatpush1.msra.mxu0 %v572
      %665 = vmatprep.subr.mxu0 0.0
      %666 = vmatpush1.msra.mxu0 %v571
      %667 = vmatprep.subr.mxu0 0.0
      %668 = vmatpush2.msra.mxu0 0.0
      %669 = vmatprep.subr.mxu0 0.0
      %670 = vmatpush2.msra.mxu0 0.0
      %671 = vmatprep.subr.mxu0 0.0
      %672 = vmatpush2.msra.mxu0 0.0
      %673 = vmatprep.subr.mxu0 0.0
      %674 = vmatpush2.msra.mxu0 0.0
      %675 = vmatprep.subr.mxu0 0.0
      %676 = vmatpush2.msra.mxu0 0.0
      %677 = vmatprep.subr.mxu0 0.0
      %678 = vmatpush2.msra.mxu0 0.0
      %679 = vmatprep.subr.mxu0 0.0
      %680 = vmatpush2.msra.mxu0 0.0
      %681 = vmatprep.subr.mxu0 0.0
      %682 = vmatpush2.msra.mxu0 0.0
      %683 = vmatprep.subr.mxu0 0.0
      %684 = vmatpush2.msra.mxu0 0.0
      %685 = vmatprep.subr.mxu0 0.0
      %686 = vmatpush2.msra.mxu0 0.0
      %687 = vmatprep.subr.mxu0 0.0
      %688 = vmatpush2.msra.mxu0 0.0
      %689 = vmatprep.subr.mxu0 0.0
      %690 = vmatpush2.msra.mxu0 0.0
      %691 = vmatprep.subr.mxu0 0.0
      %692 = vmatpush2.msra.mxu0 0.0
      %693 = vmatprep.subr.mxu0 0.0
      %694 = vmatpush2.msra.mxu0 0.0
      %695 = vmatprep.subr.mxu0 0.0
      %696 = vmatpush2.msra.mxu0 0.0
      %697 = vmatprep.subr.mxu0 0.0
      %698 = vmatpush2.msra.mxu0 0.0
      %699 = vmatprep.mubr.f32.mxu0 0.0
      %700 = vmatmul.mubr.f32.gmra.mxu0 %v588
      %v701 = vpop.f32.mrf.mxu0
      %v702 = vadd.f32 %v584, %v701
      %v703 = vpop.f32.mrf.mxu0
      %704 = vmatprep.mubr.f32.mxu0 0.0
      %705 = vmatmul.mubr.f32.gmra.mxu0 %v591
      %v706 = vpop.f32.mrf.mxu0
      %v707 = vadd.f32 %v584, %v706
      %v708 = vpop.f32.mrf.mxu0
      %709 = vmatprep.mubr.f32.mxu0 0.0
      %710 = vmatmul.mubr.f32.gmra.mxu0 %v594
      %v711 = vpop.f32.mrf.mxu0
      %v712 = vadd.f32 %v584, %v711
      %v713 = vpop.f32.mrf.mxu0
      %714 = vmatprep.mubr.f32.mxu0 0.0
      %715 = vmatmul.mubr.f32.gmra.mxu0 %v597
      %v716 = vpop.f32.mrf.mxu0
      %v717 = vadd.f32 %v584, %v716
      %v718 = vpop.f32.mrf.mxu0
      %719 = vmatprep.mubr.f32.mxu0 0.0
      %720 = vmatmul.mubr.f32.gmra.mxu0 %v600
      %v721 = vpop.f32.mrf.mxu0
      %v722 = vadd.f32 %v584, %v721
      %v723 = vpop.f32.mrf.mxu0
      %724 = vmatprep.mubr.f32.mxu0 0.0
      %725 = vmatmul.mubr.f32.gmra.mxu0 %v603
      %v726 = vpop.f32.mrf.mxu0
      %v727 = vadd.f32 %v584, %v726
      %v728 = vpop.f32.mrf.mxu0
      %729 = vmatprep.mubr.f32.mxu0 0.0
      %730 = vmatmul.mubr.f32.gmra.mxu0 %v606
      %v731 = vpop.f32.mrf.mxu0
      %v732 = vadd.f32 %v584, %v731
      %v733 = vpop.f32.mrf.mxu0
      %734 = vmatprep.mubr.f32.mxu0 0.0
      %735 = vmatmul.mubr.f32.gmra.mxu0 %v609
      %v736 = vpop.f32.mrf.mxu0
      %v737 = vadd.f32 %v584, %v736
      %v738 = vpop.f32.mrf.mxu0
      %739 = vmatprep.mubr.f32.mxu0 0.0
      %740 = vmatmul.mubr.f32.gmra.mxu0 %v612
      %v741 = vpop.f32.mrf.mxu0
      %v742 = vadd.f32 %v584, %v741
      %v743 = vpop.f32.mrf.mxu0
      %744 = vmatprep.mubr.f32.mxu0 0.0
      %745 = vmatmul.mubr.f32.gmra.mxu0 %v615
      %v746 = vpop.f32.mrf.mxu0
      %v747 = vadd.f32 %v584, %v746
      %v748 = vpop.f32.mrf.mxu0
      %749 = vmatprep.mubr.f32.mxu0 0.0
      %750 = vmatmul.mubr.f32.gmra.mxu0 %v618
      %v751 = vpop.f32.mrf.mxu0
      %v752 = vadd.f32 %v584, %v751
      %v753 = vpop.f32.mrf.mxu0
      %754 = vmatprep.mubr.f32.mxu0 0.0
      %755 = vmatmul.mubr.f32.gmra.mxu0 %v621
      %v756 = vpop.f32.mrf.mxu0
      %v757 = vadd.f32 %v584, %v756
      %v758 = vpop.f32.mrf.mxu0
      %759 = vmatprep.mubr.f32.mxu0 0.0
      %760 = vmatmul.mubr.f32.gmra.mxu0 %v624
      %v761 = vpop.f32.mrf.mxu0
      %v762 = vadd.f32 %v584, %v761
      %v763 = vpop.f32.mrf.mxu0
      %764 = vmatprep.mubr.f32.mxu0 0.0
      %765 = vmatmul.mubr.f32.gmra.mxu0 %v627
      %v766 = vpop.f32.mrf.mxu0
      %v767 = vadd.f32 %v584, %v766
      %v768 = vpop.f32.mrf.mxu0
      %769 = vmatprep.mubr.f32.mxu0 0.0
      %770 = vmatmul.mubr.f32.gmra.mxu0 %v630
      %v771 = vpop.f32.mrf.mxu0
      %v772 = vadd.f32 %v584, %v771
      %v773 = vpop.f32.mrf.mxu0
      %774 = vmatprep.mubr.f32.mxu0 0.0
      %775 = vmatmul.mubr.f32.gmra.mxu0 %v633
      %v776 = vpop.f32.mrf.mxu0
      %v777 = vadd.f32 %v584, %v776
      %v778 = vpop.f32.mrf.mxu0
      %779 = vdwg.mxu0
      %v780 = vmax.f32 %v702, 0.0
      %v781 = vmax.f32 %v707, 0.0
      %v782 = vmax.f32 %v712, 0.0
      %v783 = vmax.f32 %v717, 0.0
      %v784 = vmax.f32 %v722, 0.0
      %v785 = vmax.f32 %v727, 0.0
      %v786 = vmax.f32 %v732, 0.0
      %v787 = vmax.f32 %v737, 0.0
      %v788 = vmax.f32 %v742, 0.0
      %v789 = vmax.f32 %v747, 0.0
      %v790 = vmax.f32 %v752, 0.0
      %v791 = vmax.f32 %v757, 0.0
      %v792 = vmax.f32 %v762, 0.0
      %v793 = vmax.f32 %v767, 0.0
      %v794 = vmax.f32 %v772, 0.0
      %v795 = vmax.f32 %v777, 0.0
      %v796 = vld [vmem:[%s5] sm:$0xff]
      %v797 = vld [vmem:[%s5 + $0x8] sm:$0xff]
      %v798 = vld [vmem:[%s5 + $0x10] sm:$0xff]
      %v799 = vld [vmem:[%s5 + $0x18] sm:$0xff]
      %v800 = vld [vmem:[%s6] sm:$0x1]
      %v802 = vlaneseq
      %v803 = vshrl.u32 %v802, 7
      %v804 = vsub.s32 0, %v803
      %v805 = vrot.slane %v800, %v804
      %vm807 = vcmask 261120
      %v809 = vsel %vm807, %v780, 0
      %v812 = vsel %vm807, %v781, 0
      %v815 = vsel %vm807, %v782, 0
      %v818 = vsel %vm807, %v783, 0
      %v821 = vsel %vm807, %v784, 0
      %v824 = vsel %vm807, %v785, 0
      %v827 = vsel %vm807, %v786, 0
      %v830 = vsel %vm807, %v787, 0
      %v833 = vsel %vm807, %v788, 0
      %v836 = vsel %vm807, %v789, 0
      %v839 = vsel %vm807, %v790, 0
      %v842 = vsel %vm807, %v791, 0
      %v845 = vsel %vm807, %v792, 0
      %v848 = vsel %vm807, %v793, 0
      %v851 = vsel %vm807, %v794, 0
      %v854 = vsel %vm807, %v795, 0
      %856 = vmatprep.subr.mxu0 0.0
      %857 = vmatpush1.msra.mxu0 0.0
      %858 = vmatprep.subr.mxu0 0.0
      %859 = vmatpush1.msra.mxu0 0.0
      %860 = vmatprep.subr.mxu0 0.0
      %861 = vmatpush1.msra.mxu0 0.0
      %862 = vmatprep.subr.mxu0 0.0
      %863 = vmatpush1.msra.mxu0 0.0
      %864 = vmatprep.subr.mxu0 0.0
      %865 = vmatpush1.msra.mxu0 0.0
      %866 = vmatprep.subr.mxu0 0.0
      %867 = vmatpush1.msra.mxu0 0.0
      %868 = vmatprep.subr.mxu0 0.0
      %869 = vmatpush1.msra.mxu0 0.0
      %870 = vmatprep.subr.mxu0 0.0
      %871 = vmatpush1.msra.mxu0 0.0
      %872 = vmatprep.subr.mxu0 0.0
      %873 = vmatpush1.msra.mxu0 0.0
      %874 = vmatprep.subr.mxu0 0.0
      %875 = vmatpush1.msra.mxu0 0.0
      %876 = vmatprep.subr.mxu0 0.0
      %877 = vmatpush1.msra.mxu0 0.0
      %878 = vmatprep.subr.mxu0 0.0
      %879 = vmatpush1.msra.mxu0 0.0
      %880 = vmatprep.subr.mxu0 0.0
      %881 = vmatpush1.msra.mxu0 %v799
      %882 = vmatprep.subr.mxu0 0.0
      %883 = vmatpush1.msra.mxu0 %v798
      %884 = vmatprep.subr.mxu0 0.0
      %885 = vmatpush1.msra.mxu0 %v797
      %886 = vmatprep.subr.mxu0 0.0
      %887 = vmatpush1.msra.mxu0 %v796
      %888 = vmatprep.subr.mxu0 0.0
      %889 = vmatpush2.msra.mxu0 0.0
      %890 = vmatprep.subr.mxu0 0.0
      %891 = vmatpush2.msra.mxu0 0.0
      %892 = vmatprep.subr.mxu0 0.0
      %893 = vmatpush2.msra.mxu0 0.0
      %894 = vmatprep.subr.mxu0 0.0
      %895 = vmatpush2.msra.mxu0 0.0
      %896 = vmatprep.subr.mxu0 0.0
      %897 = vmatpush2.msra.mxu0 0.0
      %898 = vmatprep.subr.mxu0 0.0
      %899 = vmatpush2.msra.mxu0 0.0
      %900 = vmatprep.subr.mxu0 0.0
      %901 = vmatpush2.msra.mxu0 0.0
      %902 = vmatprep.subr.mxu0 0.0
      %903 = vmatpush2.msra.mxu0 0.0
      %904 = vmatprep.subr.mxu0 0.0
      %905 = vmatpush2.msra.mxu0 0.0
      %906 = vmatprep.subr.mxu0 0.0
      %907 = vmatpush2.msra.mxu0 0.0
      %908 = vmatprep.subr.mxu0 0.0
      %909 = vmatpush2.msra.mxu0 0.0
      %910 = vmatprep.subr.mxu0 0.0
      %911 = vmatpush2.msra.mxu0 0.0
      %912 = vmatprep.subr.mxu0 0.0
      %913 = vmatpush2.msra.mxu0 0.0
      %914 = vmatprep.subr.mxu0 0.0
      %915 = vmatpush2.msra.mxu0 0.0
      %916 = vmatprep.subr.mxu0 0.0
      %917 = vmatpush2.msra.mxu0 0.0
      %918 = vmatprep.subr.mxu0 0.0
      %919 = vmatpush2.msra.mxu0 0.0
      %920 = vmatprep.mubr.f32.mxu0 0.0
      %921 = vmatmul.mubr.f32.gmra.mxu0 %v809
      %v922 = vpop.f32.mrf.mxu0
      %v923 = vadd.f32 %v805, %v922
      %v924 = vpop.f32.mrf.mxu0
      %925 = vmatprep.mubr.f32.mxu0 0.0
      %926 = vmatmul.mubr.f32.gmra.mxu0 %v812
      %v927 = vpop.f32.mrf.mxu0
      %v928 = vadd.f32 %v805, %v927
      %v929 = vpop.f32.mrf.mxu0
      %930 = vmatprep.mubr.f32.mxu0 0.0
      %931 = vmatmul.mubr.f32.gmra.mxu0 %v815
      %v932 = vpop.f32.mrf.mxu0
      %v933 = vadd.f32 %v805, %v932
      %v934 = vpop.f32.mrf.mxu0
      %935 = vmatprep.mubr.f32.mxu0 0.0
      %936 = vmatmul.mubr.f32.gmra.mxu0 %v818
      %v937 = vpop.f32.mrf.mxu0
      %v938 = vadd.f32 %v805, %v937
      %v939 = vpop.f32.mrf.mxu0
      %940 = vmatprep.mubr.f32.mxu0 0.0
      %941 = vmatmul.mubr.f32.gmra.mxu0 %v821
      %v942 = vpop.f32.mrf.mxu0
      %v943 = vadd.f32 %v805, %v942
      %v944 = vpop.f32.mrf.mxu0
      %945 = vmatprep.mubr.f32.mxu0 0.0
      %946 = vmatmul.mubr.f32.gmra.mxu0 %v824
      %v947 = vpop.f32.mrf.mxu0
      %v948 = vadd.f32 %v805, %v947
      %v949 = vpop.f32.mrf.mxu0
      %950 = vmatprep.mubr.f32.mxu0 0.0
      %951 = vmatmul.mubr.f32.gmra.mxu0 %v827
      %v952 = vpop.f32.mrf.mxu0
      %v953 = vadd.f32 %v805, %v952
      %v954 = vpop.f32.mrf.mxu0
      %955 = vmatprep.mubr.f32.mxu0 0.0
      %956 = vmatmul.mubr.f32.gmra.mxu0 %v830
      %v957 = vpop.f32.mrf.mxu0
      %v958 = vadd.f32 %v805, %v957
      %v959 = vpop.f32.mrf.mxu0
      %960 = vmatprep.mubr.f32.mxu0 0.0
      %961 = vmatmul.mubr.f32.gmra.mxu0 %v833
      %v962 = vpop.f32.mrf.mxu0
      %v963 = vadd.f32 %v805, %v962
      %v964 = vpop.f32.mrf.mxu0
      %965 = vmatprep.mubr.f32.mxu0 0.0
      %966 = vmatmul.mubr.f32.gmra.mxu0 %v836
      %v967 = vpop.f32.mrf.mxu0
      %v968 = vadd.f32 %v805, %v967
      %v969 = vpop.f32.mrf.mxu0
      %970 = vmatprep.mubr.f32.mxu0 0.0
      %971 = vmatmul.mubr.f32.gmra.mxu0 %v839
      %v972 = vpop.f32.mrf.mxu0
      %v973 = vadd.f32 %v805, %v972
      %v974 = vpop.f32.mrf.mxu0
      %975 = vmatprep.mubr.f32.mxu0 0.0
      %976 = vmatmul.mubr.f32.gmra.mxu0 %v842
      %v977 = vpop.f32.mrf.mxu0
      %v978 = vadd.f32 %v805, %v977
      %v979 = vpop.f32.mrf.mxu0
      %980 = vmatprep.mubr.f32.mxu0 0.0
      %981 = vmatmul.mubr.f32.gmra.mxu0 %v845
      %v982 = vpop.f32.mrf.mxu0
      %v983 = vadd.f32 %v805, %v982
      %v984 = vpop.f32.mrf.mxu0
      %985 = vmatprep.mubr.f32.mxu0 0.0
      %986 = vmatmul.mubr.f32.gmra.mxu0 %v848
      %v987 = vpop.f32.mrf.mxu0
      %v988 = vadd.f32 %v805, %v987
      %v989 = vpop.f32.mrf.mxu0
      %990 = vmatprep.mubr.f32.mxu0 0.0
      %991 = vmatmul.mubr.f32.gmra.mxu0 %v851
      %v992 = vpop.f32.mrf.mxu0
      %v993 = vadd.f32 %v805, %v992
      %v994 = vpop.f32.mrf.mxu0
      %995 = vmatprep.mubr.f32.mxu0 0.0
      %996 = vmatmul.mubr.f32.gmra.mxu0 %v854
      %v997 = vpop.f32.mrf.mxu0
      %v998 = vadd.f32 %v805, %v997
      %v999 = vpop.f32.mrf.mxu0
      %1000 = vdwg.mxu0
      %v1001 = vmax.f32 %v923, 0.0
      %v1002 = vmax.f32 %v928, 0.0
      %v1003 = vmax.f32 %v933, 0.0
      %v1004 = vmax.f32 %v938, 0.0
      %v1005 = vmax.f32 %v943, 0.0
      %v1006 = vmax.f32 %v948, 0.0
      %v1007 = vmax.f32 %v953, 0.0
      %v1008 = vmax.f32 %v958, 0.0
      %v1009 = vmax.f32 %v963, 0.0
      %v1010 = vmax.f32 %v968, 0.0
      %v1011 = vmax.f32 %v973, 0.0
      %v1012 = vmax.f32 %v978, 0.0
      %v1013 = vmax.f32 %v983, 0.0
      %v1014 = vmax.f32 %v988, 0.0
      %v1015 = vmax.f32 %v993, 0.0
      %v1016 = vmax.f32 %v998, 0.0
      %v1017 = vld [vmem:[%s7] sm:$0xff]
      %v1018 = vld [vmem:[%s7 + $0x8] sm:$0xff]
      %v1019 = vld [vmem:[%s7 + $0x10] sm:$0xff]
      %v1020 = vld [vmem:[%s7 + $0x18] sm:$0xff]
      %v1021 = vld [vmem:[%s7 + $0x20] sm:$0xff]
      %v1022 = vld [vmem:[%s7 + $0x28] sm:$0xff]
      %v1023 = vld [vmem:[%s7 + $0x30] sm:$0xff]
      %v1024 = vld [vmem:[%s7 + $0x38] sm:$0xff]
      %v1025 = vld [vmem:[%s7 + $0x40] sm:$0xff]
      %v1026 = vld [vmem:[%s7 + $0x48] sm:$0xff]
      %v1027 = vld [vmem:[%s7 + $0x50] sm:$0xff]
      %v1028 = vld [vmem:[%s7 + $0x58] sm:$0xff]
      %v1029 = vld [vmem:[%s7 + $0x60] sm:$0xff]
      %v1030 = vld [vmem:[%s7 + $0x68] sm:$0xff]
      %v1031 = vld [vmem:[%s7 + $0x70] sm:$0xff]
      %v1032 = vld [vmem:[%s7 + $0x78] sm:$0xff]
      %v1033 = vld [vmem:[%s8] sm:$0x1]
      %v1035 = vlaneseq
      %v1036 = vshrl.u32 %v1035, 7
      %v1037 = vsub.s32 0, %v1036
      %v1038 = vrot.slane %v1033, %v1037
      %1040 = vmatprep.subr.mxu0 0.0
      %1041 = vmatpush1.msra.mxu0 %v1032
      %1042 = vmatprep.subr.mxu0 0.0
      %1043 = vmatpush1.msra.mxu0 %v1031
      %1044 = vmatprep.subr.mxu0 0.0
      %1045 = vmatpush1.msra.mxu0 %v1030
      %1046 = vmatprep.subr.mxu0 0.0
      %1047 = vmatpush1.msra.mxu0 %v1029
      %1048 = vmatprep.subr.mxu0 0.0
      %1049 = vmatpush1.msra.mxu0 %v1028
      %1050 = vmatprep.subr.mxu0 0.0
      %1051 = vmatpush1.msra.mxu0 %v1027
      %1052 = vmatprep.subr.mxu0 0.0
      %1053 = vmatpush1.msra.mxu0 %v1026
      %1054 = vmatprep.subr.mxu0 0.0
      %1055 = vmatpush1.msra.mxu0 %v1025
      %1056 = vmatprep.subr.mxu0 0.0
      %1057 = vmatpush1.msra.mxu0 %v1024
      %1058 = vmatprep.subr.mxu0 0.0
      %1059 = vmatpush1.msra.mxu0 %v1023
      %1060 = vmatprep.subr.mxu0 0.0
      %1061 = vmatpush1.msra.mxu0 %v1022
      %1062 = vmatprep.subr.mxu0 0.0
      %1063 = vmatpush1.msra.mxu0 %v1021
      %1064 = vmatprep.subr.mxu0 0.0
      %1065 = vmatpush1.msra.mxu0 %v1020
      %1066 = vmatprep.subr.mxu0 0.0
      %1067 = vmatpush1.msra.mxu0 %v1019
      %1068 = vmatprep.subr.mxu0 0.0
      %1069 = vmatpush1.msra.mxu0 %v1018
      %1070 = vmatprep.subr.mxu0 0.0
      %1071 = vmatpush1.msra.mxu0 %v1017
      %1072 = vmatprep.subr.mxu0 0.0
      %1073 = vmatpush2.msra.mxu0 0.0
      %1074 = vmatprep.subr.mxu0 0.0
      %1075 = vmatpush2.msra.mxu0 0.0
      %1076 = vmatprep.subr.mxu0 0.0
      %1077 = vmatpush2.msra.mxu0 0.0
      %1078 = vmatprep.subr.mxu0 0.0
      %1079 = vmatpush2.msra.mxu0 0.0
      %1080 = vmatprep.subr.mxu0 0.0
      %1081 = vmatpush2.msra.mxu0 0.0
      %1082 = vmatprep.subr.mxu0 0.0
      %1083 = vmatpush2.msra.mxu0 0.0
      %1084 = vmatprep.subr.mxu0 0.0
      %1085 = vmatpush2.msra.mxu0 0.0
      %1086 = vmatprep.subr.mxu0 0.0
      %1087 = vmatpush2.msra.mxu0 0.0
      %1088 = vmatprep.subr.mxu0 0.0
      %1089 = vmatpush2.msra.mxu0 0.0
      %1090 = vmatprep.subr.mxu0 0.0
      %1091 = vmatpush2.msra.mxu0 0.0
      %1092 = vmatprep.subr.mxu0 0.0
      %1093 = vmatpush2.msra.mxu0 0.0
      %1094 = vmatprep.subr.mxu0 0.0
      %1095 = vmatpush2.msra.mxu0 0.0
      %1096 = vmatprep.subr.mxu0 0.0
      %1097 = vmatpush2.msra.mxu0 0.0
      %1098 = vmatprep.subr.mxu0 0.0
      %1099 = vmatpush2.msra.mxu0 0.0
      %1100 = vmatprep.subr.mxu0 0.0
      %1101 = vmatpush2.msra.mxu0 0.0
      %1102 = vmatprep.subr.mxu0 0.0
      %1103 = vmatpush2.msra.mxu0 0.0
      %1104 = vmatprep.mubr.f32.mxu0 0.0
      %1105 = vmatmul.mubr.f32.gmra.mxu0 %v1001
      %v1106 = vpop.f32.mrf.mxu0
      %v1107 = vadd.f32 %v1038, %v1106
      %v1108 = vpop.f32.mrf.mxu0
      %1109 = vmatprep.mubr.f32.mxu0 0.0
      %1110 = vmatmul.mubr.f32.gmra.mxu0 %v1002
      %v1111 = vpop.f32.mrf.mxu0
      %v1112 = vadd.f32 %v1038, %v1111
      %v1113 = vpop.f32.mrf.mxu0
      %1114 = vmatprep.mubr.f32.mxu0 0.0
      %1115 = vmatmul.mubr.f32.gmra.mxu0 %v1003
      %v1116 = vpop.f32.mrf.mxu0
      %v1117 = vadd.f32 %v1038, %v1116
      %v1118 = vpop.f32.mrf.mxu0
      %1119 = vmatprep.mubr.f32.mxu0 0.0
      %1120 = vmatmul.mubr.f32.gmra.mxu0 %v1004
      %v1121 = vpop.f32.mrf.mxu0
      %v1122 = vadd.f32 %v1038, %v1121
      %v1123 = vpop.f32.mrf.mxu0
      %1124 = vmatprep.mubr.f32.mxu0 0.0
      %1125 = vmatmul.mubr.f32.gmra.mxu0 %v1005
      %v1126 = vpop.f32.mrf.mxu0
      %v1127 = vadd.f32 %v1038, %v1126
      %v1128 = vpop.f32.mrf.mxu0
      %1129 = vmatprep.mubr.f32.mxu0 0.0
      %1130 = vmatmul.mubr.f32.gmra.mxu0 %v1006
      %v1131 = vpop.f32.mrf.mxu0
      %v1132 = vadd.f32 %v1038, %v1131
      %v1133 = vpop.f32.mrf.mxu0
      %1134 = vmatprep.mubr.f32.mxu0 0.0
      %1135 = vmatmul.mubr.f32.gmra.mxu0 %v1007
      %v1136 = vpop.f32.mrf.mxu0
      %v1137 = vadd.f32 %v1038, %v1136
      %v1138 = vpop.f32.mrf.mxu0
      %1139 = vmatprep.mubr.f32.mxu0 0.0
      %1140 = vmatmul.mubr.f32.gmra.mxu0 %v1008
      %v1141 = vpop.f32.mrf.mxu0
      %v1142 = vadd.f32 %v1038, %v1141
      %v1143 = vpop.f32.mrf.mxu0
      %1144 = vmatprep.mubr.f32.mxu0 0.0
      %1145 = vmatmul.mubr.f32.gmra.mxu0 %v1009
      %v1146 = vpop.f32.mrf.mxu0
      %v1147 = vadd.f32 %v1038, %v1146
      %v1148 = vpop.f32.mrf.mxu0
      %1149 = vmatprep.mubr.f32.mxu0 0.0
      %1150 = vmatmul.mubr.f32.gmra.mxu0 %v1010
      %v1151 = vpop.f32.mrf.mxu0
      %v1152 = vadd.f32 %v1038, %v1151
      %v1153 = vpop.f32.mrf.mxu0
      %1154 = vmatprep.mubr.f32.mxu0 0.0
      %1155 = vmatmul.mubr.f32.gmra.mxu0 %v1011
      %v1156 = vpop.f32.mrf.mxu0
      %v1157 = vadd.f32 %v1038, %v1156
      %v1158 = vpop.f32.mrf.mxu0
      %1159 = vmatprep.mubr.f32.mxu0 0.0
      %1160 = vmatmul.mubr.f32.gmra.mxu0 %v1012
      %v1161 = vpop.f32.mrf.mxu0
      %v1162 = vadd.f32 %v1038, %v1161
      %v1163 = vpop.f32.mrf.mxu0
      %1164 = vmatprep.mubr.f32.mxu0 0.0
      %1165 = vmatmul.mubr.f32.gmra.mxu0 %v1013
      %v1166 = vpop.f32.mrf.mxu0
      %v1167 = vadd.f32 %v1038, %v1166
      %v1168 = vpop.f32.mrf.mxu0
      %1169 = vmatprep.mubr.f32.mxu0 0.0
      %1170 = vmatmul.mubr.f32.gmra.mxu0 %v1014
      %v1171 = vpop.f32.mrf.mxu0
      %v1172 = vadd.f32 %v1038, %v1171
      %v1173 = vpop.f32.mrf.mxu0
      %1174 = vmatprep.mubr.f32.mxu0 0.0
      %1175 = vmatmul.mubr.f32.gmra.mxu0 %v1015
      %v1176 = vpop.f32.mrf.mxu0
      %v1177 = vadd.f32 %v1038, %v1176
      %v1178 = vpop.f32.mrf.mxu0
      %1179 = vmatprep.mubr.f32.mxu0 0.0
      %1180 = vmatmul.mubr.f32.gmra.mxu0 %v1016
      %v1181 = vpop.f32.mrf.mxu0
      %v1182 = vadd.f32 %v1038, %v1181
      %v1183 = vpop.f32.mrf.mxu0
      %1184 = vdwg.mxu0
      %1185 = vst [vmem:[%s334] sm:$0xff] %v1107
      %1186 = vst [vmem:[%s334 + $0x8] sm:$0xff] %v1112
      %1187 = vst [vmem:[%s334 + $0x10] sm:$0xff] %v1117
      %1188 = vst [vmem:[%s334 + $0x18] sm:$0xff] %v1122
      %1189 = vst [vmem:[%s334 + $0x20] sm:$0xff] %v1127
      %1190 = vst [vmem:[%s334 + $0x28] sm:$0xff] %v1132
      %1191 = vst [vmem:[%s334 + $0x30] sm:$0xff] %v1137
      %1192 = vst [vmem:[%s334 + $0x38] sm:$0xff] %v1142
      %1193 = vst [vmem:[%s334 + $0x40] sm:$0xff] %v1147
      %1194 = vst [vmem:[%s334 + $0x48] sm:$0xff] %v1152
      %1195 = vst [vmem:[%s334 + $0x50] sm:$0xff] %v1157
      %1196 = vst [vmem:[%s334 + $0x58] sm:$0xff] %v1162
      %1197 = vst [vmem:[%s334 + $0x60] sm:$0xff] %v1167
      %1198 = vst [vmem:[%s334 + $0x68] sm:$0xff] %v1172
      %1199 = vst [vmem:[%s334 + $0x70] sm:$0xff] %v1177
      %1200 = vst [vmem:[%s334 + $0x78] sm:$0xff] %v1182
      %s1201 = smul.u32 16, %s20
      %p1202 = scmp.lt.s32.totalorder %s1201, 63
      %s1203 = scalar_select %p1202, %s1201, 63
      %s1204 = smul.addr %s1203, 8
      %s1205 = scalar_lea.vmem %s9, %s1204
      // Predicated region
      $region57: #{_forward_impl.1} parent=55 // pred_check
        %p1206 = pneg %p232
      $region58: #{_forward_impl.1} parent=55 // pred_check_branch
        %1208 = sbr.rel (%p1206) target = $region60
      $region59: #{_forward_impl.1} parent=55 // pred_region
        %s1209 = smul.u32 16, %s20
      $region60: #{_forward_impl.1} parent=55 // pred_fallthru
        _
    $region56: #{_forward_impl.1} parent=5 // pred_fallthru
      _
    %p1210 = scmp.le.s32.totalorder 2, %s15
    // Predicated region
    $region61: #{_forward_impl.1} parent=5 // pred_check
      %p1211 = pneg %p1210
    $region62: #{_forward_impl.1} parent=5 // pred_check_branch
      %1213 = sbr.rel (%p1211) target = $region64
    $region63: #{_forward_impl.1} parent=5 // pred_region
      %s1214 = ssub.s32 %s15, 2
      // Predicated region
      $region65: #{_forward_impl.1} parent=63 // pred_check
        %p1215 = pneg %p238
      $region66: #{_forward_impl.1} parent=63 // pred_check_branch
        %1217 = sbr.rel (%p1215) target = $region68
      $region67: #{_forward_impl.1} parent=63 // pred_region
        %s1218 = smul.u32 16, %s21
        %p1219 = scmp.lt.s32.totalorder %s1218, 63
        %s1220 = scalar_select %p1219, %s1218, 63
        %s1221 = smul.addr %s1220, 8
        %s1222 = scalar_lea.vmem %s9, %s1221
      $region68: #{_forward_impl.1} parent=63 // pred_fallthru
        _
    $region64: #{_forward_impl.1} parent=5 // pred_fallthru
      _
  $region6: #{_forward_impl.1} parent=0 // loop_footer
    %s19 = sadd.s32 1, %s15
  $region7: #{_forward_impl.1} parent=0 // loop_footer_branch
    %14 = sbr.rel target = $region3
  $region8: #{_forward_impl.1} parent=0 // loop_exit
    _

</llo_original>
